<compile_context>
chip_gen: v6e
topology: v6e:2x2x1
jax: 0.10.0
libtpu: 0.0.40
codegen_flags: <defaults>
</compile_context>

<pallas_src>
import functools

import jax
import jax.numpy as jnp
from jax.experimental import pallas as pl
from jax.experimental.pallas import tpu as pltpu

_LANE = 128
_SUBLANE = 8


def _round_up(n, m):
    return (n + m - 1) // m * m


def _pad2d(a, rows, cols):
    pr, pc = rows - a.shape[0], cols - a.shape[1]
    if pr == 0 and pc == 0:
        return a
    return jnp.pad(a, ((0, pr), (0, pc)))


def _mlp_kernel(x_ref, w1_ref, b1_ref, w2_ref, b2_ref, w3_ref, b3_ref,
                w4_ref, b4_ref, o_ref):
    # All four GEMMs + tanh activations fused in one kernel invocation.
    # MXU for the dots (bf16 or f32 operands, f32 accumulation),
    # VPU for the f32 bias adds, EUP for the f32 tanh.
    w1 = w1_ref[...]
    mxu_dt = w1.dtype
    h = jnp.tanh(
        jnp.dot(x_ref[...].astype(mxu_dt), w1,
                preferred_element_type=jnp.float32) + b1_ref[...])
    h = jnp.tanh(
        jnp.dot(h.astype(mxu_dt), w2_ref[...],
                preferred_element_type=jnp.float32) + b2_ref[...])
    h = jnp.tanh(
        jnp.dot(h.astype(mxu_dt), w3_ref[...],
                preferred_element_type=jnp.float32) + b3_ref[...])
    y = (jnp.dot(h.astype(mxu_dt), w4_ref[...],
                 preferred_element_type=jnp.float32) + b4_ref[...])
    # Lane-dense (block_b, out_pad=128k) store -> unmasked vst.
    o_ref[...] = y.astype(o_ref.dtype)


@functools.partial(
    jax.jit,
    static_argnames=("block_b", "mxu_dtype", "single_buffer_weights"))
def mlp_regression_forward(x, params, *, block_b=None,
                           mxu_dtype=jnp.bfloat16,
                           single_buffer_weights=False):
    """x: (B, input_dim) f32.  params: w1..w4 (fan_in, fan_out), b1..b4 (1, fan_out)."""
    B, in_dim = x.shape
    h1 = params["w1"].shape[1]
    h2 = params["w2"].shape[1]
    h3 = params["w3"].shape[1]
    out_dim = params["w4"].shape[1]

    # Lane-dense padded feature dims (multiples of 128 lanes).
    in_p = _round_up(in_dim, _LANE)
    h1_p = _round_up(h1, _LANE)
    h2_p = _round_up(h2, _LANE)
    h3_p = _round_up(h3, _LANE)
    out_p = _round_up(out_dim, _LANE)

    # Batch tile: multiple of 8 sublanes, <= 512 rows, and >= 2 grid steps
    # whenever the batch is large enough (uses both TCs on v7x).
    if block_b is None:
        block_b = max(_SUBLANE, min(512, _round_up((B + 1) // 2, _SUBLANE)))
    block_b = _round_up(block_b, _SUBLANE)
    B_p = _round_up(B, block_b)
    grid = (B_p // block_b,)

    # Zero-pad (and cast) parameters to the lane-dense layout.
    # NOTE: in production, pre-pad/cast the params once outside the hot path.
    w1 = _pad2d(params["w1"], in_p, h1_p).astype(mxu_dtype)
    w2 = _pad2d(params["w2"], h1_p, h2_p).astype(mxu_dtype)
    w3 = _pad2d(params["w3"], h2_p, h3_p).astype(mxu_dtype)
    w4 = _pad2d(params["w4"], h3_p, out_p).astype(mxu_dtype)
    b1 = _pad2d(params["b1"], 1, h1_p)
    b2 = _pad2d(params["b2"], 1, h2_p)
    b3 = _pad2d(params["b3"], 1, h3_p)
    b4 = _pad2d(params["b4"], 1, out_p)
    x_p = _pad2d(x, B_p, in_p)

    def const_spec(shape):
        # Grid-invariant weight/bias blocks.  Optionally single-buffered to
        # halve their VMEM footprint (useful for large hidden dims on v7x).
        if single_buffer_weights:
            return pl.BlockSpec(shape, lambda i: (0, 0),
                                pipeline_mode=pl.Buffered(1))
        return pl.BlockSpec(shape, lambda i: (0, 0))

    in_specs = [pl.BlockSpec((block_b, in_p), lambda i: (i, 0))]
    for arr in (w1, b1, w2, b2, w3, b3, w4, b4):
        in_specs.append(const_spec(arr.shape))
    out_specs = pl.BlockSpec((block_b, out_p), lambda i: (i, 0))

    y_p = pl.pallas_call(
        _mlp_kernel,
        out_shape=jax.ShapeDtypeStruct((B_p, out_p), x.dtype),
        grid_spec=pltpu.PrefetchScalarGridSpec(
            num_scalar_prefetch=0,
            grid=grid,
            in_specs=in_specs,
            out_specs=out_specs,
        ),
        compiler_params=pltpu.CompilerParams(
            dimension_semantics=("parallel",),
            vmem_limit_bytes=32 * 1024 * 1024,  # safe on v5e/v6e/v7x
        ),
    )(x_p, w1, b1, w2, b2, w3, b3, w4, b4)

    # Slice away batch / lane padding outside the kernel.
    return y_p[:B, :out_dim]


def init_params(key, input_dim, output_dim, h1, h2, h3):
    """Deterministic init mimicking nn.Linear default (U[-1/sqrt(fan_in), +])."""
    dims = [(input_dim, h1), (h1, h2), (h2, h3), (h3, output_dim)]
    params = {}
    keys = jax.random.split(key, 2 * len(dims))
    for idx, (fan_in, fan_out) in enumerate(dims):
        bound = 1.0 / jnp.sqrt(jnp.float32(fan_in))
        w = jax.random.uniform(keys[2 * idx], (fan_in, fan_out),
                               jnp.float32, -bound, bound)
        b = jax.random.uniform(keys[2 * idx + 1], (1, fan_out),
                               jnp.float32, -bound, bound)
        params[f"w{idx + 1}"] = w
        params[f"b{idx + 1}"] = b
    return params


def _reference(x, params):
    h = jnp.tanh(x @ params["w1"] + params["b1"])
    h = jnp.tanh(h @ params["w2"] + params["b2"])
    h = jnp.tanh(h @ params["w3"] + params["b3"])
    return h @ params["w4"] + params["b4"]


if __name__ == "__main__":
    key = jax.random.PRNGKey(0)
    k_param, k_x, k_x2 = jax.random.split(key, 3)

    # Small shapes consistent with MLPRegression(input_dim, output_dim, h1, h2, h3).
    B, input_dim, output_dim = 8, 16, 4
    h1, h2, h3 = 32, 32, 32

    params = init_params(k_param, input_dim, output_dim, h1, h2, h3)
    x = jax.random.normal(k_x, (B, input_dim), jnp.float32)
    y_ref = _reference(x, params)

    # Exact-math path (f32 MXU operands).
    y_f32 = jax.block_until_ready(
        mlp_regression_forward(x, params, mxu_dtype=jnp.float32))
    assert y_f32.shape == (B, output_dim)
    assert jnp.allclose(y_f32, y_ref, atol=1e-5, rtol=1e-5)

    # Recommended v6e/v7x path: bf16 MXU operands, f32 accumulation + f32 tanh.
    y_bf16 = jax.block_until_ready(
        mlp_regression_forward(x, params, mxu_dtype=jnp.bfloat16))
    assert y_bf16.shape == (B, output_dim)
    assert jnp.allclose(y_bf16, y_ref, atol=3e-2, rtol=3e-2)

    # Larger, non-divisible batch: exercises multi-step grid, batch padding,
    # and megacore-friendly (>=2 step) tiling.
    B2 = 1037
    x2 = jax.random.normal(k_x2, (B2, input_dim), jnp.float32)
    y2 = jax.block_until_ready(
        mlp_regression_forward(x2, params, mxu_dtype=jnp.float32))
    assert y2.shape == (B2, output_dim)
    assert jnp.allclose(y2, _reference(x2, params), atol=1e-4, rtol=1e-4)

    print("KERNEL_OK")
</pallas_src>

<mosaic_0001>
module attributes {stable_mosaic.version = 11 : i64} {
  func.func @_mlp_kernel(%arg0: i32, %arg1: memref<8x128xf32, #tpu.memory_space<vmem>>, %arg2: memref<128x128xf32, #tpu.memory_space<vmem>>, %arg3: memref<1x128xf32, #tpu.memory_space<vmem>>, %arg4: memref<128x128xf32, #tpu.memory_space<vmem>>, %arg5: memref<1x128xf32, #tpu.memory_space<vmem>>, %arg6: memref<128x128xf32, #tpu.memory_space<vmem>>, %arg7: memref<1x128xf32, #tpu.memory_space<vmem>>, %arg8: memref<128x128xf32, #tpu.memory_space<vmem>>, %arg9: memref<1x128xf32, #tpu.memory_space<vmem>>, %arg10: memref<8x128xf32, #tpu.memory_space<vmem>>) attributes {dimension_semantics = [#tpu.dimension_semantics<parallel>], iteration_bounds = array<i64: 1>, scalar_prefetch = 0 : i64, scratch_operands = 0 : i64, tpu.core_type = #tpu.core_type<tc>, window_params = [{transform_indices = @transform_0, window_bounds = array<i64: 8, 128>}, {pipeline_mode = #tpu.pipeline_mode<synchronous>, transform_indices = @transform_1, window_bounds = array<i64: 128, 128>}, {pipeline_mode = #tpu.pipeline_mode<synchronous>, transform_indices = @transform_2, window_bounds = array<i64: 1, 128>}, {pipeline_mode = #tpu.pipeline_mode<synchronous>, transform_indices = @transform_3, window_bounds = array<i64: 128, 128>}, {pipeline_mode = #tpu.pipeline_mode<synchronous>, transform_indices = @transform_4, window_bounds = array<i64: 1, 128>}, {pipeline_mode = #tpu.pipeline_mode<synchronous>, transform_indices = @transform_5, window_bounds = array<i64: 128, 128>}, {pipeline_mode = #tpu.pipeline_mode<synchronous>, transform_indices = @transform_6, window_bounds = array<i64: 1, 128>}, {pipeline_mode = #tpu.pipeline_mode<synchronous>, transform_indices = @transform_7, window_bounds = array<i64: 128, 128>}, {pipeline_mode = #tpu.pipeline_mode<synchronous>, transform_indices = @transform_8, window_bounds = array<i64: 1, 128>}, {transform_indices = @transform_9, window_bounds = array<i64: 8, 128>}]} {
    %c0 = arith.constant 0 : index
    %c0_0 = arith.constant 0 : index
    %0 = vector.load %arg2[%c0, %c0_0] : memref<128x128xf32, #tpu.memory_space<vmem>>, vector<128x128xf32>
    %c0_1 = arith.constant 0 : index
    %c0_2 = arith.constant 0 : index
    %1 = vector.load %arg1[%c0_1, %c0_2] : memref<8x128xf32, #tpu.memory_space<vmem>>, vector<8x128xf32>
    %cst = arith.constant dense<0.000000e+00> : vector<8x128xf32>
    %2 = tpu.matmul %1, %0, %cst {dimension_numbers = #tpu.dot_dimension_numbers<[1], [0], [0], [1], [0, 0, 1, 1], [], []>} : vector<8x128xf32>, vector<128x128xf32>, vector<8x128xf32> -> vector<8x128xf32>
    %c0_3 = arith.constant 0 : index
    %c0_4 = arith.constant 0 : index
    %3 = vector.load %arg3[%c0_3, %c0_4] : memref<1x128xf32, #tpu.memory_space<vmem>>, vector<1x128xf32>
    %4 = vector.broadcast %3 : vector<1x128xf32> to vector<8x128xf32>
    %5 = arith.addf %2, %4 : vector<8x128xf32>
    %6 = math.tanh %5 : vector<8x128xf32>
    %c0_5 = arith.constant 0 : index
    %c0_6 = arith.constant 0 : index
    %7 = vector.load %arg4[%c0_5, %c0_6] : memref<128x128xf32, #tpu.memory_space<vmem>>, vector<128x128xf32>
    %cst_7 = arith.constant dense<0.000000e+00> : vector<8x128xf32>
    %8 = tpu.matmul %6, %7, %cst_7 {dimension_numbers = #tpu.dot_dimension_numbers<[1], [0], [0], [1], [0, 0, 1, 1], [], []>} : vector<8x128xf32>, vector<128x128xf32>, vector<8x128xf32> -> vector<8x128xf32>
    %c0_8 = arith.constant 0 : index
    %c0_9 = arith.constant 0 : index
    %9 = vector.load %arg5[%c0_8, %c0_9] : memref<1x128xf32, #tpu.memory_space<vmem>>, vector<1x128xf32>
    %10 = vector.broadcast %9 : vector<1x128xf32> to vector<8x128xf32>
    %11 = arith.addf %8, %10 : vector<8x128xf32>
    %12 = math.tanh %11 : vector<8x128xf32>
    %c0_10 = arith.constant 0 : index
    %c0_11 = arith.constant 0 : index
    %13 = vector.load %arg6[%c0_10, %c0_11] : memref<128x128xf32, #tpu.memory_space<vmem>>, vector<128x128xf32>
    %cst_12 = arith.constant dense<0.000000e+00> : vector<8x128xf32>
    %14 = tpu.matmul %12, %13, %cst_12 {dimension_numbers = #tpu.dot_dimension_numbers<[1], [0], [0], [1], [0, 0, 1, 1], [], []>} : vector<8x128xf32>, vector<128x128xf32>, vector<8x128xf32> -> vector<8x128xf32>
    %c0_13 = arith.constant 0 : index
    %c0_14 = arith.constant 0 : index
    %15 = vector.load %arg7[%c0_13, %c0_14] : memref<1x128xf32, #tpu.memory_space<vmem>>, vector<1x128xf32>
    %16 = vector.broadcast %15 : vector<1x128xf32> to vector<8x128xf32>
    %17 = arith.addf %14, %16 : vector<8x128xf32>
    %18 = math.tanh %17 : vector<8x128xf32>
    %c0_15 = arith.constant 0 : index
    %c0_16 = arith.constant 0 : index
    %19 = vector.load %arg8[%c0_15, %c0_16] : memref<128x128xf32, #tpu.memory_space<vmem>>, vector<128x128xf32>
    %cst_17 = arith.constant dense<0.000000e+00> : vector<8x128xf32>
    %20 = tpu.matmul %18, %19, %cst_17 {dimension_numbers = #tpu.dot_dimension_numbers<[1], [0], [0], [1], [0, 0, 1, 1], [], []>} : vector<8x128xf32>, vector<128x128xf32>, vector<8x128xf32> -> vector<8x128xf32>
    %c0_18 = arith.constant 0 : index
    %c0_19 = arith.constant 0 : index
    %21 = vector.load %arg9[%c0_18, %c0_19] : memref<1x128xf32, #tpu.memory_space<vmem>>, vector<1x128xf32>
    %22 = vector.broadcast %21 : vector<1x128xf32> to vector<8x128xf32>
    %23 = arith.addf %20, %22 : vector<8x128xf32>
    %c0_20 = arith.constant 0 : index
    %c0_21 = arith.constant 0 : index
    %24 = vector.load %arg10[%c0_20, %c0_21] : memref<8x128xf32, #tpu.memory_space<vmem>>, vector<8x128xf32>
    tpu.vector_store %arg10[%c0_20, %c0_21], %23 {strides = array<i32>} : memref<8x128xf32, #tpu.memory_space<vmem>>, vector<8x128xf32>,
    return
  }
  func.func @transform_0(%arg0: i32) -> (i32, i32) {
    %c0_i32 = arith.constant 0 : i32
    %c0_i32_0 = arith.constant 0 : i32
    return %arg0, %c0_i32 : i32, i32
  }
  func.func @transform_1(%arg0: i32) -> (i32, i32) {
    %c0_i32 = arith.constant 0 : i32
    %c0_i32_0 = arith.constant 0 : i32
    %c0_i32_1 = arith.constant 0 : i32
    return %c0_i32, %c0_i32_0 : i32, i32
  }
  func.func @transform_2(%arg0: i32) -> (i32, i32) {
    %c0_i32 = arith.constant 0 : i32
    %c0_i32_0 = arith.constant 0 : i32
    %c0_i32_1 = arith.constant 0 : i32
    return %c0_i32, %c0_i32_0 : i32, i32
  }
  func.func @transform_3(%arg0: i32) -> (i32, i32) {
    %c0_i32 = arith.constant 0 : i32
    %c0_i32_0 = arith.constant 0 : i32
    %c0_i32_1 = arith.constant 0 : i32
    return %c0_i32, %c0_i32_0 : i32, i32
  }
  func.func @transform_4(%arg0: i32) -> (i32, i32) {
    %c0_i32 = arith.constant 0 : i32
    %c0_i32_0 = arith.constant 0 : i32
    %c0_i32_1 = arith.constant 0 : i32
    return %c0_i32, %c0_i32_0 : i32, i32
  }
  func.func @transform_5(%arg0: i32) -> (i32, i32) {
    %c0_i32 = arith.constant 0 : i32
    %c0_i32_0 = arith.constant 0 : i32
    %c0_i32_1 = arith.constant 0 : i32
    return %c0_i32, %c0_i32_0 : i32, i32
  }
  func.func @transform_6(%arg0: i32) -> (i32, i32) {
    %c0_i32 = arith.constant 0 : i32
    %c0_i32_0 = arith.constant 0 : i32
    %c0_i32_1 = arith.constant 0 : i32
    return %c0_i32, %c0_i32_0 : i32, i32
  }
  func.func @transform_7(%arg0: i32) -> (i32, i32) {
    %c0_i32 = arith.constant 0 : i32
    %c0_i32_0 = arith.constant 0 : i32
    %c0_i32_1 = arith.constant 0 : i32
    return %c0_i32, %c0_i32_0 : i32, i32
  }
  func.func @transform_8(%arg0: i32) -> (i32, i32) {
    %c0_i32 = arith.constant 0 : i32
    %c0_i32_0 = arith.constant 0 : i32
    %c0_i32_1 = arith.constant 0 : i32
    return %c0_i32, %c0_i32_0 : i32, i32
  }
  func.func @transform_9(%arg0: i32) -> (i32, i32) {
    %c0_i32 = arith.constant 0 : i32
    %c0_i32_0 = arith.constant 0 : i32
    return %arg0, %c0_i32 : i32, i32
  }
}

</mosaic_0001>

<llo_original>
// kernel: mlp_regression_forward.1
$region0: #{mlp_regression_forward.1}
  #allocation0 [shape = 'u32[]', space=smem, size = 0x4, offset = 0x4, fixed_abs, tag = 'smem constant byte address 0x4 - core index']
  #allocation1 [shape = 'u32[144,128]{1,0:T(1,128)}', space=vmem, size = 0x12000, scoped, tag = 'internal scratch']
  %s0 = inlined_call_operand.vmem [shape: f32[8,128], index: 0, kind: input, shape index: {}]
  %s1 = inlined_call_operand.vmem [shape: f32[128,128], index: 1, kind: input, shape index: {}]
  %s2 = inlined_call_operand.vmem [shape: f32[1,128], index: 2, kind: input, shape index: {}]
  %s3 = inlined_call_operand.vmem [shape: f32[128,128], index: 3, kind: input, shape index: {}]
  %s4 = inlined_call_operand.vmem [shape: f32[1,128], index: 4, kind: input, shape index: {}]
  %s5 = inlined_call_operand.vmem [shape: f32[128,128], index: 5, kind: input, shape index: {}]
  %s6 = inlined_call_operand.vmem [shape: f32[1,128], index: 6, kind: input, shape index: {}]
  %s7 = inlined_call_operand.vmem [shape: f32[128,128], index: 7, kind: input, shape index: {}]
  %s8 = inlined_call_operand.vmem [shape: f32[1,128], index: 8, kind: input, shape index: {}]
  %s9 = inlined_call_operand.vmem [shape: f32[8,128], index: 9, kind: output, shape index: {}]
  %s10 = sld [smem:[#allocation0]]
  $region46: #{mlp_regression_forward.1} parent=0
    _
  %s12 = ssub.s32 1, %s10
  %s13 = scalar_select 0, %s12, %s10
  // Predicated region
  $region2: #{mlp_regression_forward.1} parent=0 // pred_check
    _
  $region3: #{mlp_regression_forward.1} parent=0 // pred_check_branch
    %15 = sbr.rel (0) target = $region5
  $region4: #{mlp_regression_forward.1} parent=0 // pred_region
    _
  $region5: #{mlp_regression_forward.1} parent=0 // pred_fallthru
    _
  // Predicated region
  $region6: #{mlp_regression_forward.1} parent=0 // pred_check
    _
  $region7: #{mlp_regression_forward.1} parent=0 // pred_check_branch
    %17 = sbr.rel (0) target = $region9
  $region8: #{mlp_regression_forward.1} parent=0 // pred_region
    _
  $region9: #{mlp_regression_forward.1} parent=0 // pred_fallthru
    _
  // Predicated region
  $region10: #{mlp_regression_forward.1} parent=0 // pred_check
    _
  $region11: #{mlp_regression_forward.1} parent=0 // pred_check_branch
    %19 = sbr.rel (0) target = $region13
  $region12: #{mlp_regression_forward.1} parent=0 // pred_region
    _
  $region13: #{mlp_regression_forward.1} parent=0 // pred_fallthru
    _
  // Predicated region
  $region14: #{mlp_regression_forward.1} parent=0 // pred_check
    _
  $region15: #{mlp_regression_forward.1} parent=0 // pred_check_branch
    %21 = sbr.rel (0) target = $region17
  $region16: #{mlp_regression_forward.1} parent=0 // pred_region
    _
  $region17: #{mlp_regression_forward.1} parent=0 // pred_fallthru
    _
  // Predicated region
  $region18: #{mlp_regression_forward.1} parent=0 // pred_check
    _
  $region19: #{mlp_regression_forward.1} parent=0 // pred_check_branch
    %23 = sbr.rel (0) target = $region21
  $region20: #{mlp_regression_forward.1} parent=0 // pred_region
    _
  $region21: #{mlp_regression_forward.1} parent=0 // pred_fallthru
    _
  // Predicated region
  $region22: #{mlp_regression_forward.1} parent=0 // pred_check
    _
  $region23: #{mlp_regression_forward.1} parent=0 // pred_check_branch
    %25 = sbr.rel (0) target = $region25
  $region24: #{mlp_regression_forward.1} parent=0 // pred_region
    _
  $region25: #{mlp_regression_forward.1} parent=0 // pred_fallthru
    _
  // Predicated region
  $region26: #{mlp_regression_forward.1} parent=0 // pred_check
    _
  $region27: #{mlp_regression_forward.1} parent=0 // pred_check_branch
    %27 = sbr.rel (0) target = $region29
  $region28: #{mlp_regression_forward.1} parent=0 // pred_region
    _
  $region29: #{mlp_regression_forward.1} parent=0 // pred_fallthru
    _
  // Predicated region
  $region30: #{mlp_regression_forward.1} parent=0 // pred_check
    _
  $region31: #{mlp_regression_forward.1} parent=0 // pred_check_branch
    %29 = sbr.rel (0) target = $region33
  $region32: #{mlp_regression_forward.1} parent=0 // pred_region
    _
  $region33: #{mlp_regression_forward.1} parent=0 // pred_fallthru
    _
  // Predicated region
  $region34: #{mlp_regression_forward.1} parent=0 // pred_check
    _
  $region35: #{mlp_regression_forward.1} parent=0 // pred_check_branch
    %31 = sbr.rel (0) target = $region37
  $region36: #{mlp_regression_forward.1} parent=0 // pred_region
    _
  $region37: #{mlp_regression_forward.1} parent=0 // pred_fallthru
    _
  %v32 = vld [vmem:[%s1] sm:$0xff]
  %v33 = vld [vmem:[%s1 + $0x8] sm:$0xff]
  %v34 = vld [vmem:[%s1 + $0x10] sm:$0xff]
  %v35 = vld [vmem:[%s1 + $0x18] sm:$0xff]
  %v36 = vld [vmem:[%s1 + $0x20] sm:$0xff]
  %v37 = vld [vmem:[%s1 + $0x28] sm:$0xff]
  %v38 = vld [vmem:[%s1 + $0x30] sm:$0xff]
  %v39 = vld [vmem:[%s1 + $0x38] sm:$0xff]
  %v40 = vld [vmem:[%s1 + $0x40] sm:$0xff]
  %v41 = vld [vmem:[%s1 + $0x48] sm:$0xff]
  %v42 = vld [vmem:[%s1 + $0x50] sm:$0xff]
  %v43 = vld [vmem:[%s1 + $0x58] sm:$0xff]
  %v44 = vld [vmem:[%s1 + $0x60] sm:$0xff]
  %v45 = vld [vmem:[%s1 + $0x68] sm:$0xff]
  %v46 = vld [vmem:[%s1 + $0x70] sm:$0xff]
  %v47 = vld [vmem:[%s1 + $0x78] sm:$0xff]
  %v48 = vld [vmem:[%s0] sm:$0xff]
  %v49 = vld [vmem:[%s2] sm:$0x1]
  %v51 = vlaneseq
  %v52 = vshrl.u32 %v51, 7
  %v53 = vsub.s32 0, %v52
  %v54 = vrot.slane %v49, %v53
  %56 = vmatprep.subr.mxu0 0.0
  %57 = vmatpush1.msra.mxu0 %v47
  %58 = vmatprep.subr.mxu0 0.0
  %59 = vmatpush1.msra.mxu0 %v46
  %60 = vmatprep.subr.mxu0 0.0
  %61 = vmatpush1.msra.mxu0 %v45
  %62 = vmatprep.subr.mxu0 0.0
  %63 = vmatpush1.msra.mxu0 %v44
  %64 = vmatprep.subr.mxu0 0.0
  %65 = vmatpush1.msra.mxu0 %v43
  %66 = vmatprep.subr.mxu0 0.0
  %67 = vmatpush1.msra.mxu0 %v42
  %68 = vmatprep.subr.mxu0 0.0
  %69 = vmatpush1.msra.mxu0 %v41
  %70 = vmatprep.subr.mxu0 0.0
  %71 = vmatpush1.msra.mxu0 %v40
  %72 = vmatprep.subr.mxu0 0.0
  %73 = vmatpush1.msra.mxu0 %v39
  %74 = vmatprep.subr.mxu0 0.0
  %75 = vmatpush1.msra.mxu0 %v38
  %76 = vmatprep.subr.mxu0 0.0
  %77 = vmatpush1.msra.mxu0 %v37
  %78 = vmatprep.subr.mxu0 0.0
  %79 = vmatpush1.msra.mxu0 %v36
  %80 = vmatprep.subr.mxu0 0.0
  %81 = vmatpush1.msra.mxu0 %v35
  %82 = vmatprep.subr.mxu0 0.0
  %83 = vmatpush1.msra.mxu0 %v34
  %84 = vmatprep.subr.mxu0 0.0
  %85 = vmatpush1.msra.mxu0 %v33
  %86 = vmatprep.subr.mxu0 0.0
  %87 = vmatpush1.msra.mxu0 %v32
  %88 = vmatprep.subr.mxu0 0.0
  %89 = vmatpush2.msra.mxu0 0.0
  %90 = vmatprep.subr.mxu0 0.0
  %91 = vmatpush2.msra.mxu0 0.0
  %92 = vmatprep.subr.mxu0 0.0
  %93 = vmatpush2.msra.mxu0 0.0
  %94 = vmatprep.subr.mxu0 0.0
  %95 = vmatpush2.msra.mxu0 0.0
  %96 = vmatprep.subr.mxu0 0.0
  %97 = vmatpush2.msra.mxu0 0.0
  %98 = vmatprep.subr.mxu0 0.0
  %99 = vmatpush2.msra.mxu0 0.0
  %100 = vmatprep.subr.mxu0 0.0
  %101 = vmatpush2.msra.mxu0 0.0
  %102 = vmatprep.subr.mxu0 0.0
  %103 = vmatpush2.msra.mxu0 0.0
  %104 = vmatprep.subr.mxu0 0.0
  %105 = vmatpush2.msra.mxu0 0.0
  %106 = vmatprep.subr.mxu0 0.0
  %107 = vmatpush2.msra.mxu0 0.0
  %108 = vmatprep.subr.mxu0 0.0
  %109 = vmatpush2.msra.mxu0 0.0
  %110 = vmatprep.subr.mxu0 0.0
  %111 = vmatpush2.msra.mxu0 0.0
  %112 = vmatprep.subr.mxu0 0.0
  %113 = vmatpush2.msra.mxu0 0.0
  %114 = vmatprep.subr.mxu0 0.0
  %115 = vmatpush2.msra.mxu0 0.0
  %116 = vmatprep.subr.mxu0 0.0
  %117 = vmatpush2.msra.mxu0 0.0
  %118 = vmatprep.subr.mxu0 0.0
  %119 = vmatpush2.msra.mxu0 0.0
  %120 = vmatprep.mubr.f32.mxu0 0.0
  %121 = vmatmul.mubr.f32.gmra.mxu0 %v48
  %v122 = vpop.f32.mrf.mxu0
  %v123 = vadd.f32 %v54, %v122
  %v124 = vpop.f32.mrf.mxu0
  %125 = vdwg.mxu0
  %v126 = vtanh.pop %v123
  %v127 = vld [vmem:[%s3] sm:$0xff]
  %v128 = vld [vmem:[%s3 + $0x8] sm:$0xff]
  %v129 = vld [vmem:[%s3 + $0x10] sm:$0xff]
  %v130 = vld [vmem:[%s3 + $0x18] sm:$0xff]
  %v131 = vld [vmem:[%s3 + $0x20] sm:$0xff]
  %v132 = vld [vmem:[%s3 + $0x28] sm:$0xff]
  %v133 = vld [vmem:[%s3 + $0x30] sm:$0xff]
  %v134 = vld [vmem:[%s3 + $0x38] sm:$0xff]
  %v135 = vld [vmem:[%s3 + $0x40] sm:$0xff]
  %v136 = vld [vmem:[%s3 + $0x48] sm:$0xff]
  %v137 = vld [vmem:[%s3 + $0x50] sm:$0xff]
  %v138 = vld [vmem:[%s3 + $0x58] sm:$0xff]
  %v139 = vld [vmem:[%s3 + $0x60] sm:$0xff]
  %v140 = vld [vmem:[%s3 + $0x68] sm:$0xff]
  %v141 = vld [vmem:[%s3 + $0x70] sm:$0xff]
  %v142 = vld [vmem:[%s3 + $0x78] sm:$0xff]
  %v143 = vld [vmem:[%s4] sm:$0x1]
  %v145 = vlaneseq
  %v146 = vshrl.u32 %v145, 7
  %v147 = vsub.s32 0, %v146
  %v148 = vrot.slane %v143, %v147
  %150 = vmatprep.subr.mxu0 0.0
  %151 = vmatpush1.msra.mxu0 %v142
  %152 = vmatprep.subr.mxu0 0.0
  %153 = vmatpush1.msra.mxu0 %v141
  %154 = vmatprep.subr.mxu0 0.0
  %155 = vmatpush1.msra.mxu0 %v140
  %156 = vmatprep.subr.mxu0 0.0
  %157 = vmatpush1.msra.mxu0 %v139
  %158 = vmatprep.subr.mxu0 0.0
  %159 = vmatpush1.msra.mxu0 %v138
  %160 = vmatprep.subr.mxu0 0.0
  %161 = vmatpush1.msra.mxu0 %v137
  %162 = vmatprep.subr.mxu0 0.0
  %163 = vmatpush1.msra.mxu0 %v136
  %164 = vmatprep.subr.mxu0 0.0
  %165 = vmatpush1.msra.mxu0 %v135
  %166 = vmatprep.subr.mxu0 0.0
  %167 = vmatpush1.msra.mxu0 %v134
  %168 = vmatprep.subr.mxu0 0.0
  %169 = vmatpush1.msra.mxu0 %v133
  %170 = vmatprep.subr.mxu0 0.0
  %171 = vmatpush1.msra.mxu0 %v132
  %172 = vmatprep.subr.mxu0 0.0
  %173 = vmatpush1.msra.mxu0 %v131
  %174 = vmatprep.subr.mxu0 0.0
  %175 = vmatpush1.msra.mxu0 %v130
  %176 = vmatprep.subr.mxu0 0.0
  %177 = vmatpush1.msra.mxu0 %v129
  %178 = vmatprep.subr.mxu0 0.0
  %179 = vmatpush1.msra.mxu0 %v128
  %180 = vmatprep.subr.mxu0 0.0
  %181 = vmatpush1.msra.mxu0 %v127
  %182 = vmatprep.subr.mxu0 0.0
  %183 = vmatpush2.msra.mxu0 0.0
  %184 = vmatprep.subr.mxu0 0.0
  %185 = vmatpush2.msra.mxu0 0.0
  %186 = vmatprep.subr.mxu0 0.0
  %187 = vmatpush2.msra.mxu0 0.0
  %188 = vmatprep.subr.mxu0 0.0
  %189 = vmatpush2.msra.mxu0 0.0
  %190 = vmatprep.subr.mxu0 0.0
  %191 = vmatpush2.msra.mxu0 0.0
  %192 = vmatprep.subr.mxu0 0.0
  %193 = vmatpush2.msra.mxu0 0.0
  %194 = vmatprep.subr.mxu0 0.0
  %195 = vmatpush2.msra.mxu0 0.0
  %196 = vmatprep.subr.mxu0 0.0
  %197 = vmatpush2.msra.mxu0 0.0
  %198 = vmatprep.subr.mxu0 0.0
  %199 = vmatpush2.msra.mxu0 0.0
  %200 = vmatprep.subr.mxu0 0.0
  %201 = vmatpush2.msra.mxu0 0.0
  %202 = vmatprep.subr.mxu0 0.0
  %203 = vmatpush2.msra.mxu0 0.0
  %204 = vmatprep.subr.mxu0 0.0
  %205 = vmatpush2.msra.mxu0 0.0
  %206 = vmatprep.subr.mxu0 0.0
  %207 = vmatpush2.msra.mxu0 0.0
  %208 = vmatprep.subr.mxu0 0.0
  %209 = vmatpush2.msra.mxu0 0.0
  %210 = vmatprep.subr.mxu0 0.0
  %211 = vmatpush2.msra.mxu0 0.0
  %212 = vmatprep.subr.mxu0 0.0
  %213 = vmatpush2.msra.mxu0 0.0
  %214 = vmatprep.mubr.f32.mxu0 0.0
  %215 = vmatmul.mubr.f32.gmra.mxu0 %v126
  %v216 = vpop.f32.mrf.mxu0
  %v217 = vadd.f32 %v148, %v216
  %v218 = vpop.f32.mrf.mxu0
  %219 = vdwg.mxu0
  %v220 = vtanh.pop %v217
  %v221 = vld [vmem:[%s5] sm:$0xff]
  %v222 = vld [vmem:[%s5 + $0x8] sm:$0xff]
  %v223 = vld [vmem:[%s5 + $0x10] sm:$0xff]
  %v224 = vld [vmem:[%s5 + $0x18] sm:$0xff]
  %v225 = vld [vmem:[%s5 + $0x20] sm:$0xff]
  %v226 = vld [vmem:[%s5 + $0x28] sm:$0xff]
  %v227 = vld [vmem:[%s5 + $0x30] sm:$0xff]
  %v228 = vld [vmem:[%s5 + $0x38] sm:$0xff]
  %v229 = vld [vmem:[%s5 + $0x40] sm:$0xff]
  %v230 = vld [vmem:[%s5 + $0x48] sm:$0xff]
  %v231 = vld [vmem:[%s5 + $0x50] sm:$0xff]
  %v232 = vld [vmem:[%s5 + $0x58] sm:$0xff]
  %v233 = vld [vmem:[%s5 + $0x60] sm:$0xff]
  %v234 = vld [vmem:[%s5 + $0x68] sm:$0xff]
  %v235 = vld [vmem:[%s5 + $0x70] sm:$0xff]
  %v236 = vld [vmem:[%s5 + $0x78] sm:$0xff]
  %v237 = vld [vmem:[%s6] sm:$0x1]
  %v239 = vlaneseq
  %v240 = vshrl.u32 %v239, 7
  %v241 = vsub.s32 0, %v240
  %v242 = vrot.slane %v237, %v241
  %244 = vmatprep.subr.mxu0 0.0
  %245 = vmatpush1.msra.mxu0 %v236
  %246 = vmatprep.subr.mxu0 0.0
  %247 = vmatpush1.msra.mxu0 %v235
  %248 = vmatprep.subr.mxu0 0.0
  %249 = vmatpush1.msra.mxu0 %v234
  %250 = vmatprep.subr.mxu0 0.0
  %251 = vmatpush1.msra.mxu0 %v233
  %252 = vmatprep.subr.mxu0 0.0
  %253 = vmatpush1.msra.mxu0 %v232
  %254 = vmatprep.subr.mxu0 0.0
  %255 = vmatpush1.msra.mxu0 %v231
  %256 = vmatprep.subr.mxu0 0.0
  %257 = vmatpush1.msra.mxu0 %v230
  %258 = vmatprep.subr.mxu0 0.0
  %259 = vmatpush1.msra.mxu0 %v229
  %260 = vmatprep.subr.mxu0 0.0
  %261 = vmatpush1.msra.mxu0 %v228
  %262 = vmatprep.subr.mxu0 0.0
  %263 = vmatpush1.msra.mxu0 %v227
  %264 = vmatprep.subr.mxu0 0.0
  %265 = vmatpush1.msra.mxu0 %v226
  %266 = vmatprep.subr.mxu0 0.0
  %267 = vmatpush1.msra.mxu0 %v225
  %268 = vmatprep.subr.mxu0 0.0
  %269 = vmatpush1.msra.mxu0 %v224
  %270 = vmatprep.subr.mxu0 0.0
  %271 = vmatpush1.msra.mxu0 %v223
  %272 = vmatprep.subr.mxu0 0.0
  %273 = vmatpush1.msra.mxu0 %v222
  %274 = vmatprep.subr.mxu0 0.0
  %275 = vmatpush1.msra.mxu0 %v221
  %276 = vmatprep.subr.mxu0 0.0
  %277 = vmatpush2.msra.mxu0 0.0
  %278 = vmatprep.subr.mxu0 0.0
  %279 = vmatpush2.msra.mxu0 0.0
  %280 = vmatprep.subr.mxu0 0.0
  %281 = vmatpush2.msra.mxu0 0.0
  %282 = vmatprep.subr.mxu0 0.0
  %283 = vmatpush2.msra.mxu0 0.0
  %284 = vmatprep.subr.mxu0 0.0
  %285 = vmatpush2.msra.mxu0 0.0
  %286 = vmatprep.subr.mxu0 0.0
  %287 = vmatpush2.msra.mxu0 0.0
  %288 = vmatprep.subr.mxu0 0.0
  %289 = vmatpush2.msra.mxu0 0.0
  %290 = vmatprep.subr.mxu0 0.0
  %291 = vmatpush2.msra.mxu0 0.0
  %292 = vmatprep.subr.mxu0 0.0
  %293 = vmatpush2.msra.mxu0 0.0
  %294 = vmatprep.subr.mxu0 0.0
  %295 = vmatpush2.msra.mxu0 0.0
  %296 = vmatprep.subr.mxu0 0.0
  %297 = vmatpush2.msra.mxu0 0.0
  %298 = vmatprep.subr.mxu0 0.0
  %299 = vmatpush2.msra.mxu0 0.0
  %300 = vmatprep.subr.mxu0 0.0
  %301 = vmatpush2.msra.mxu0 0.0
  %302 = vmatprep.subr.mxu0 0.0
  %303 = vmatpush2.msra.mxu0 0.0
  %304 = vmatprep.subr.mxu0 0.0
  %305 = vmatpush2.msra.mxu0 0.0
  %306 = vmatprep.subr.mxu0 0.0
  %307 = vmatpush2.msra.mxu0 0.0
  %308 = vmatprep.mubr.f32.mxu0 0.0
  %309 = vmatmul.mubr.f32.gmra.mxu0 %v220
  %v310 = vpop.f32.mrf.mxu0
  %v311 = vadd.f32 %v242, %v310
  %v312 = vpop.f32.mrf.mxu0
  %313 = vdwg.mxu0
  %v314 = vtanh.pop %v311
  %v315 = vld [vmem:[%s7] sm:$0xff]
  %v316 = vld [vmem:[%s7 + $0x8] sm:$0xff]
  %v317 = vld [vmem:[%s7 + $0x10] sm:$0xff]
  %v318 = vld [vmem:[%s7 + $0x18] sm:$0xff]
  %v319 = vld [vmem:[%s7 + $0x20] sm:$0xff]
  %v320 = vld [vmem:[%s7 + $0x28] sm:$0xff]
  %v321 = vld [vmem:[%s7 + $0x30] sm:$0xff]
  %v322 = vld [vmem:[%s7 + $0x38] sm:$0xff]
  %v323 = vld [vmem:[%s7 + $0x40] sm:$0xff]
  %v324 = vld [vmem:[%s7 + $0x48] sm:$0xff]
  %v325 = vld [vmem:[%s7 + $0x50] sm:$0xff]
  %v326 = vld [vmem:[%s7 + $0x58] sm:$0xff]
  %v327 = vld [vmem:[%s7 + $0x60] sm:$0xff]
  %v328 = vld [vmem:[%s7 + $0x68] sm:$0xff]
  %v329 = vld [vmem:[%s7 + $0x70] sm:$0xff]
  %v330 = vld [vmem:[%s7 + $0x78] sm:$0xff]
  %v331 = vld [vmem:[%s8] sm:$0x1]
  %v333 = vlaneseq
  %v334 = vshrl.u32 %v333, 7
  %v335 = vsub.s32 0, %v334
  %v336 = vrot.slane %v331, %v335
  %338 = vmatprep.subr.mxu0 0.0
  %339 = vmatpush1.msra.mxu0 %v330
  %340 = vmatprep.subr.mxu0 0.0
  %341 = vmatpush1.msra.mxu0 %v329
  %342 = vmatprep.subr.mxu0 0.0
  %343 = vmatpush1.msra.mxu0 %v328
  %344 = vmatprep.subr.mxu0 0.0
  %345 = vmatpush1.msra.mxu0 %v327
  %346 = vmatprep.subr.mxu0 0.0
  %347 = vmatpush1.msra.mxu0 %v326
  %348 = vmatprep.subr.mxu0 0.0
  %349 = vmatpush1.msra.mxu0 %v325
  %350 = vmatprep.subr.mxu0 0.0
  %351 = vmatpush1.msra.mxu0 %v324
  %352 = vmatprep.subr.mxu0 0.0
  %353 = vmatpush1.msra.mxu0 %v323
  %354 = vmatprep.subr.mxu0 0.0
  %355 = vmatpush1.msra.mxu0 %v322
  %356 = vmatprep.subr.mxu0 0.0
  %357 = vmatpush1.msra.mxu0 %v321
  %358 = vmatprep.subr.mxu0 0.0
  %359 = vmatpush1.msra.mxu0 %v320
  %360 = vmatprep.subr.mxu0 0.0
  %361 = vmatpush1.msra.mxu0 %v319
  %362 = vmatprep.subr.mxu0 0.0
  %363 = vmatpush1.msra.mxu0 %v318
  %364 = vmatprep.subr.mxu0 0.0
  %365 = vmatpush1.msra.mxu0 %v317
  %366 = vmatprep.subr.mxu0 0.0
  %367 = vmatpush1.msra.mxu0 %v316
  %368 = vmatprep.subr.mxu0 0.0
  %369 = vmatpush1.msra.mxu0 %v315
  %370 = vmatprep.subr.mxu0 0.0
  %371 = vmatpush2.msra.mxu0 0.0
  %372 = vmatprep.subr.mxu0 0.0
  %373 = vmatpush2.msra.mxu0 0.0
  %374 = vmatprep.subr.mxu0 0.0
  %375 = vmatpush2.msra.mxu0 0.0
  %376 = vmatprep.subr.mxu0 0.0
  %377 = vmatpush2.msra.mxu0 0.0
  %378 = vmatprep.subr.mxu0 0.0
  %379 = vmatpush2.msra.mxu0 0.0
  %380 = vmatprep.subr.mxu0 0.0
  %381 = vmatpush2.msra.mxu0 0.0
  %382 = vmatprep.subr.mxu0 0.0
  %383 = vmatpush2.msra.mxu0 0.0
  %384 = vmatprep.subr.mxu0 0.0
  %385 = vmatpush2.msra.mxu0 0.0
  %386 = vmatprep.subr.mxu0 0.0
  %387 = vmatpush2.msra.mxu0 0.0
  %388 = vmatprep.subr.mxu0 0.0
  %389 = vmatpush2.msra.mxu0 0.0
  %390 = vmatprep.subr.mxu0 0.0
  %391 = vmatpush2.msra.mxu0 0.0
  %392 = vmatprep.subr.mxu0 0.0
  %393 = vmatpush2.msra.mxu0 0.0
  %394 = vmatprep.subr.mxu0 0.0
  %395 = vmatpush2.msra.mxu0 0.0
  %396 = vmatprep.subr.mxu0 0.0
  %397 = vmatpush2.msra.mxu0 0.0
  %398 = vmatprep.subr.mxu0 0.0
  %399 = vmatpush2.msra.mxu0 0.0
  %400 = vmatprep.subr.mxu0 0.0
  %401 = vmatpush2.msra.mxu0 0.0
  %402 = vmatprep.mubr.f32.mxu0 0.0
  %403 = vmatmul.mubr.f32.gmra.mxu0 %v314
  %v404 = vpop.f32.mrf.mxu0
  %v405 = vadd.f32 %v336, %v404
  %v406 = vpop.f32.mrf.mxu0
  %407 = vdwg.mxu0
  %408 = vst [vmem:[%s9] sm:$0xff] %v405
  // Predicated region
  $region38: #{mlp_regression_forward.1} parent=0 // pred_check
    _
  $region39: #{mlp_regression_forward.1} parent=0 // pred_check_branch
    %410 = sbr.rel (0) target = $region41
  $region40: #{mlp_regression_forward.1} parent=0 // pred_region
    _
  $region41: #{mlp_regression_forward.1} parent=0 // pred_fallthru
    _
  // Predicated region
  $region42: #{mlp_regression_forward.1} parent=0 // pred_check
    _
  $region43: #{mlp_regression_forward.1} parent=0 // pred_check_branch
    %412 = sbr.rel (0) target = $region45
  $region44: #{mlp_regression_forward.1} parent=0 // pred_region
    _
  $region45: #{mlp_regression_forward.1} parent=0 // pred_fallthru
    _

</llo_original>
